<compile_context>
chip_gen: v7x
topology: tpu7x:2x2x1
jax: 0.10.0
libtpu: 0.0.40
codegen_flags: <defaults>
</compile_context>

<pallas_src>
import functools

import jax
import jax.numpy as jnp
from jax.experimental import pallas as pl
from jax.experimental.pallas import tpu as pltpu


# ----------------------------------------------------------------------------
# Semantically exact port of EncoderBase
# ----------------------------------------------------------------------------
class EncoderBase:
    """JAX port of the (empty) PyTorch EncoderBase module."""

    def __init__(self, config=None):
        # PyTorch __init__ registers no parameters / buffers.
        self.config = config

    def forward(self):
        # PyTorch forward(self): `pass`  ->  returns None.
        return None

    __call__ = forward


def encoder_base_forward():
    """Exact forward semantics: no inputs, returns None."""
    return EncoderBase(config=None).forward()


# ----------------------------------------------------------------------------
# Per-generation tuning (derived ONCE at import time, outside any jit)
# ----------------------------------------------------------------------------
_LANE = 128


def _derive_tpu_tuning():
    """Return (vmem_limit_bytes, per-buffer tile budget, min grid steps).

    Uses only the documented TpuInfo field (vmem_capacity_bytes) and falls
    back to conservative defaults if the query is unavailable.
    """
    vmem_capacity = 128 * 1024 * 1024  # v5e / v6e physical VMEM per TC
    try:
        vmem_capacity = int(pltpu.get_tpu_info().vmem_capacity_bytes)
    except Exception:
        pass
    # Explicit scoped-VMEM request: half of physical, capped at 64 MiB.
    #   v5e/v6e (128 MiB physical) -> 64 MiB   (vs 16/32 MiB defaults)
    #   v7x     ( 64 MiB physical) -> 32 MiB
    vmem_limit = min(vmem_capacity // 2, 64 * 1024 * 1024)
    # Per live buffer budget: double-buffered in + out = 4 live buffers, plus
    # headroom for an optional 3rd input buffer and compiler-internal scratch.
    tile_budget = max(512 * 1024, vmem_limit // 10)
    # Only v7x (64 MiB VMEM per TC) has 2 TensorCores per chip; a couple of
    # parallel grid steps is enough to feed both.  On single-TC v5e/v6e the
    # grid is a sequential loop, so never shrink tiles to manufacture steps.
    is_v7x_like = vmem_capacity <= 64 * 1024 * 1024
    min_grid_steps = 2 if is_v7x_like else 1
    return vmem_limit, tile_budget, min_grid_steps


_VMEM_LIMIT_BYTES, _VMEM_TILE_BUDGET, _MIN_GRID_STEPS = _derive_tpu_tuning()


def _sublane_min(dtype) -> int:
    """Minimum second-minor tile dim for the dtype (packed vreg height).

    Unexpected itemsizes (e.g. 8-byte f64, rare on TPU) fall through to 8.
    """
    return {4: 8, 2: 16, 1: 32}.get(jnp.dtype(dtype).itemsize, 8)


def _round_up(x: int, m: int) -> int:
    return ((x + m - 1) // m) * m


def _lane_dense_2d(x: jax.Array):
    """Flatten to a lane-dense (rows, cols) slab; returns (x2d, orig_shape).

    Greedily folds trailing dims into the lane axis until the product is a
    multiple of 128 (or only the leading dim remains), so the last dim maps
    densely onto the 128-lane axis and stores stay unmasked.  The contiguous
    reshape is a free bitcast (no pad, no extra HBM round trip).
    """
    shape = x.shape
    if x.ndim <= 1:
        return x.reshape(1, max(1, x.size)), shape
    cols = 1
    split = x.ndim
    for axis in range(x.ndim - 1, 0, -1):
        cols *= shape[axis]
        split = axis
        if cols % _LANE == 0:
            break
    rows = 1
    for axis in range(split):
        rows *= shape[axis]
    return x.reshape(rows, cols), shape


# ----------------------------------------------------------------------------
# 1) Identity path: single HBM->HBM DMA, no VMEM round trip
# ----------------------------------------------------------------------------
def _hbm_copy_kernel(x_hbm, o_hbm, sem):
    # One DMA stream HBM->HBM: 1x read + 1x write, zero VMEM pressure.
    cp = pltpu.make_async_copy(x_hbm, o_hbm, sem)
    cp.start()
    cp.wait()


@jax.jit
def encoder_passthrough(x_nchw: jax.Array) -> jax.Array:
    """Identity pass of an NCHW tensor through a Pallas kernel.

    Minimal-traffic placeholder: the data never enters VMEM; the kernel issues
    a single HBM->HBM DMA (the only lever for a memory-bound memcpy).
    """
    x2d, orig_shape = _lane_dense_2d(x_nchw)
    rows, cols = x2d.shape
    nbytes = rows * cols * x2d.dtype.itemsize

    out2d = pl.pallas_call(
        _hbm_copy_kernel,
        out_shape=jax.ShapeDtypeStruct((rows, cols), x2d.dtype),
        in_specs=[pl.BlockSpec(memory_space=pl.ANY)],
        out_specs=pl.BlockSpec(memory_space=pl.ANY),
        scratch_shapes=[pltpu.SemaphoreType.DMA(())],
        # Pure memory op: lets XLA's scheduler overlap surrounding HLO.
        cost_estimate=pl.CostEstimate(
            flops=0, transcendentals=0, bytes_accessed=2 * nbytes
        ),
    )(x2d)

    return out2d.reshape(orig_shape)


# ----------------------------------------------------------------------------
# 2) VMEM-tiled grid skeleton (what a concrete subclass builds compute into)
# ----------------------------------------------------------------------------
def _copy_tile_kernel(x_ref, o_ref):
    # Whole-tile pass-through (single unmasked full-vreg store per tile).
    # A concrete encoder replaces this body with MXU-tiled compute.
    o_ref[...] = x_ref[...]


def _choose_tiles(rows: int, cols: int, itemsize: int, sub_min: int):
    """Pick (tile_rows, tile_cols) for the 2-D grid.

    Full-extent dims are exempt from the (sub_min, 128) divisibility rule;
    partial tiles are multiples of it and Pallas handles ragged last blocks.
    """
    budget = _VMEM_TILE_BUDGET

    # Column tile: full extent whenever a minimum-height stripe fits the
    # per-buffer budget; otherwise the largest 128-lane multiple that does.
    if cols <= _LANE or cols * sub_min * itemsize <= budget:
        tile_cols = cols
    else:
        tile_cols = (budget // (sub_min * itemsize)) // _LANE * _LANE
        tile_cols = min(max(_LANE, tile_cols), cols)

    # Row tile: full extent if everything fits, else the largest sublane
    # multiple that fits the budget with the chosen column tile.
    if rows * tile_cols * itemsize <= budget:
        tile_rows = rows
    else:
        tile_rows = (budget // (tile_cols * itemsize)) // sub_min * sub_min
        tile_rows = min(max(sub_min, tile_rows), rows)

    # Manufacture a few parallel grid steps ONLY on multi-TC chips (v7x);
    # on single-TC v5e/v6e the grid is sequential and shrinking tiles just
    # adds ~0.35 us per extra step while halving DMA size.
    col_steps = pl.cdiv(cols, tile_cols)
    if (
        _MIN_GRID_STEPS > 1
        and col_steps * pl.cdiv(rows, tile_rows) < _MIN_GRID_STEPS
        and tile_rows > sub_min
    ):
        want = pl.cdiv(rows, max(1, _MIN_GRID_STEPS // col_steps))
        tile_rows = min(tile_rows, max(sub_min, _round_up(want, sub_min)))

    return tile_rows, tile_cols


@functools.partial(jax.jit, donate_argnums=(0,))
def encoder_passthrough_tiled(x_nchw: jax.Array) -> jax.Array:
    """Tiled VMEM identity copy — the structural skeleton for subclasses.

    The input is DONATED at the jit boundary so input_output_aliases={0: 0}
    genuinely reuses the input's HBM buffer (no defensive full-size copy).
    Callers must not reuse the argument after this call.
    """
    x2d, orig_shape = _lane_dense_2d(x_nchw)
    rows, cols = x2d.shape
    itemsize = x2d.dtype.itemsize

    sub_min = _sublane_min(x2d.dtype)
    tile_rows, tile_cols = _choose_tiles(rows, cols, itemsize, sub_min)
    grid = (pl.cdiv(rows, tile_rows), pl.cdiv(cols, tile_cols))

    # Strided per-step HBM reads (column tiling) -> one extra input buffer
    # hides DMA descriptor latency; budget (limit/10) already allows it.
    if tile_cols < cols:
        in_spec = pl.BlockSpec(
            (tile_rows, tile_cols), lambda i, j: (i, j),
            pipeline_mode=pl.Buffered(3),
        )
    else:
        in_spec = pl.BlockSpec((tile_rows, tile_cols), lambda i, j: (i, j))

    out2d = pl.pallas_call(
        _copy_tile_kernel,
        out_shape=jax.ShapeDtypeStruct((rows, cols), x2d.dtype),
        grid=grid,
        in_specs=[in_spec],
        out_specs=pl.BlockSpec((tile_rows, tile_cols), lambda i, j: (i, j)),
        # With the jit-level donation above this alias is honored in place.
        input_output_aliases={0: 0},
        cost_estimate=pl.CostEstimate(
            flops=0,
            transcendentals=0,
            bytes_accessed=2 * rows * cols * itemsize,
        ),
        compiler_params=pltpu.CompilerParams(
            dimension_semantics=("parallel", "parallel"),
            vmem_limit_bytes=_VMEM_LIMIT_BYTES,
        ),
    )(x2d)

    return out2d.reshape(orig_shape)


if __name__ == "__main__":
    # Exact-semantics forward: no inputs, returns None.
    assert encoder_base_forward() is None

    key = jax.random.PRNGKey(0)
    x = jax.random.normal(key, (2, 4, 16, 16), dtype=jnp.float32)  # NCHW

    # (1) HBM->HBM DMA identity (no VMEM round trip).
    y = jax.block_until_ready(encoder_passthrough(x))
    assert y.shape == x.shape and y.dtype == x.dtype
    assert bool(jnp.allclose(y, x))

    # (2) VMEM-tiled skeleton with donated, aliased I/O.  Donate a fresh
    # buffer so `x` stays valid for the reference comparison.
    x_donated = x + 0.0
    y2 = jax.block_until_ready(encoder_passthrough_tiled(x_donated))
    assert y2.shape == x.shape and y2.dtype == x.dtype
    assert bool(jnp.allclose(y2, x))

    print("KERNEL_OK")
</pallas_src>

<mosaic_0001>
module attributes {stable_mosaic.version = 11 : i64} {
  func.func @_hbm_copy_kernel(%arg0: memref<8x256xf32, #tpu.memory_space<any>>, %arg1: memref<8x256xf32, #tpu.memory_space<any>>, %arg2: memref<!tpu.dma_semaphore, #tpu.memory_space<semaphore_mem>>) attributes {dimension_semantics = [], scalar_prefetch = 0 : i64, scratch_operands = 1 : i64, tpu.core_type = #tpu.core_type<tc>} {
    tpu.enqueue_dma source(%arg0 : memref<8x256xf32, #tpu.memory_space<any>>) target(%arg1 : memref<8x256xf32, #tpu.memory_space<any>>) target_semaphore(%arg2 : memref<!tpu.dma_semaphore, #tpu.memory_space<semaphore_mem>>)
    tpu.wait_dma2 semaphore(%arg2 : memref<!tpu.dma_semaphore, #tpu.memory_space<semaphore_mem>>) src(%arg0 : memref<8x256xf32, #tpu.memory_space<any>>) dst(%arg1 : memref<8x256xf32, #tpu.memory_space<any>>)
    return
  }
}

</mosaic_0001>

<llo_original>
// kernel: encoder_passthrough.1
$region0: #{encoder_passthrough.1}
  #allocation0 [shape = 'u32[]', space=smem, size = 0x4, offset = 0x4, fixed_abs, tag = 'smem constant byte address 0x4 - core index']
  #allocation1 [shape = 'u32[144,128]{1,0:T(1,128)}', space=vmem, size = 0x12000, scoped, tag = 'internal scratch']
  #allocation2 [shape = 's32[1]{0}', space=sflag, size = 0x4, scoped, tag = 'scratch operand']
  #allocation3 [shape = 's32[]', space=sflag, size = 0x4, offset = 0, fixed_abs, tag = 'sflag constant byte address 0x0 - dummy sync flag']
  %s0 = inlined_call_operand.vmem [shape: f32[8,256], index: 0, kind: input, shape index: {}]
  %s1 = inlined_call_operand.vmem [shape: f32[8,256], index: 1, kind: output, shape index: {}]
  %s2 = sld [smem:[#allocation0]]
  $region36: #{encoder_passthrough.1} parent=0
    _
  %s4 = ssub.s32 1, %s2
  %s5 = scalar_select 0, %s4, %s2
  %p7 = scmp.lt.u32.totalorder 16, 8
  %p8 = pneg %p7
  // Predicated region
  $region2: #{encoder_passthrough.1} parent=0 // pred_check
    _
  $region3: #{encoder_passthrough.1} parent=0 // pred_check_branch
    %10 = sbr.rel (%p7) target = $region5
  $region4: #{encoder_passthrough.1} parent=0 // pred_region
    %s25 = sand.u32 16, 7
    %p26 = scmp.eq.s32.totalorder %s25, 0
    // Predicated region
    $region17: #{encoder_passthrough.1} parent=4 // pred_check
      %p27 = pneg %p26
    $region18: #{encoder_passthrough.1} parent=4 // pred_check_branch
      %29 = sbr.rel (%p27) target = $region20
    $region19: #{encoder_passthrough.1} parent=4 // pred_region
      loop: start=0, step=1, limit=1
      $region21: #{encoder_passthrough.1} parent=19 // loop_pre_header
        _
      $region22: #{encoder_passthrough.1} parent=19 // loop_header
        %s31 = sphi 0, %s35
        %p32 = scmp.ge.s32.totalorder %s31, 1
        %s36 = sphi %s0, %s0
        %s37 = sphi %s1, %s1
      $region23: #{encoder_passthrough.1} parent=19 // loop_header_branch
        %34 = sbr.rel (%p32) target = $region27
      $region24: #{encoder_passthrough.1} parent=19 // loop_body
        %v38 = vld [vmem:[%s36] sm:$0xff]
        %39 = vst [vmem:[%s37] sm:$0xff] %v38
        %v40 = vld [vmem:[%s36 + $0x8] sm:$0xff]
        %41 = vst [vmem:[%s37 + $0x8] sm:$0xff] %v40
      $region25: #{encoder_passthrough.1} parent=19 // loop_footer
        %s35 = sadd.s32 1, %s31
      $region26: #{encoder_passthrough.1} parent=19 // loop_footer_branch
        %30 = sbr.rel target = $region22
      $region27: #{encoder_passthrough.1} parent=19 // loop_exit
        _
    $region20: #{encoder_passthrough.1} parent=4 // pred_fallthru
      _
    %p42 = pneg %p26
    // Predicated region
    $region28: #{encoder_passthrough.1} parent=4 // pred_check
      _
    $region29: #{encoder_passthrough.1} parent=4 // pred_check_branch
      %44 = sbr.rel (%p26) target = $region31
    $region30: #{encoder_passthrough.1} parent=4 // pred_region
      %s45 = sand.u32 16, 7
    $region31: #{encoder_passthrough.1} parent=4 // pred_fallthru
      _
  $region5: #{encoder_passthrough.1} parent=0 // pred_fallthru
    _
  // Predicated region
  $region6: #{encoder_passthrough.1} parent=0 // pred_check
    %p11 = pneg %p7
  $region7: #{encoder_passthrough.1} parent=0 // pred_check_branch
    %13 = sbr.rel (%p11) target = $region9
  $region8: #{encoder_passthrough.1} parent=0 // pred_region
    %s14 = sshllo.u32 0, 16
    loop: start=0, step=1, limit=1
    $region10: #{encoder_passthrough.1} parent=8 // loop_pre_header
      _
    $region11: #{encoder_passthrough.1} parent=8 // loop_header
      %s16 = sphi 0, %s20
      %p17 = scmp.ge.s32.totalorder %s16, 1
      %s21 = sphi %s0, %s0
      %s22 = sphi %s1, %s1
    $region12: #{encoder_passthrough.1} parent=8 // loop_header_branch
      %19 = sbr.rel (%p17) target = $region16
    $region13: #{encoder_passthrough.1} parent=8 // loop_body
      %v23 = vld [vmem:[%s21] sm:%s14]
      %24 = vst [vmem:[%s22] sm:%s14] %v23
    $region14: #{encoder_passthrough.1} parent=8 // loop_footer
      %s20 = sadd.s32 1, %s16
    $region15: #{encoder_passthrough.1} parent=8 // loop_footer_branch
      %15 = sbr.rel target = $region11
    $region16: #{encoder_passthrough.1} parent=8 // loop_exit
      _
  $region9: #{encoder_passthrough.1} parent=0 // pred_fallthru
    _
  // Predicated region
  $region32: #{encoder_passthrough.1} parent=0 // pred_check
    _
  $region33: #{encoder_passthrough.1} parent=0 // pred_check_branch
    %48 = sbr.rel (0) target = $region35
  $region34: #{encoder_passthrough.1} parent=0 // pred_region
    %49 = vsyncadd [#allocation2], 256
  $region35: #{encoder_passthrough.1} parent=0 // pred_fallthru
    _
  %s50 = smul.u32 8, 1
  %s51 = smul.u32 %s50, 2
  %s52 = sshll.u32 %s51, 4
  %53 = dma.done [#allocation2], %s52
  %54 = vsyncmov [#allocation2]
  %s55 = vpop.sfrf %54
  %p56 = scmp.eq.s32.totalorder %s55, 0
  %p57 = pneg %p56
  %59 = shalt.err (%p57)

</llo_original>
